<compile_context>
chip_gen: v7x
topology: tpu7x:2x2x1
jax: 0.10.0
libtpu: 0.0.40
codegen_flags: <defaults>
</compile_context>

<pallas_src>
import functools
import math

import jax
import jax.numpy as jnp
from jax.experimental import pallas as pl
from jax.experimental.pallas import tpu as pltpu


# ----------------------------------------------------------------------------
# Kernel
# ----------------------------------------------------------------------------
def _pool_kernel(x_ref, c_ref, o_ref, *, width, half, length, roll_fwd):
    """Process one block of packed channel planes, shape (tc, L), L = g*H*W.

    x_ref : (tc, L) input planes (lane-dense, row-major per plane)
    c_ref : (4*half + 1, L) f32 constants
              rows [0,      half) : right-neighbour validity, d = 1..half
              rows [half,  2half) : left-neighbour validity
              rows [2half, 3half) : below-neighbour (row+d) validity
              rows [3half, 4half) : above-neighbour (row-d) validity
              row   4half         : 1 / (#valid elements in the window)
    o_ref : (tc, L) output planes
    """
    x = x_ref[...].astype(jnp.float32)               # (tc, L), in registers

    def shift_read(v, delta):
        # result[j] = v[(j + delta) % L]; every wrap-around / cross-row /
        # cross-plane position is zeroed by the validity masks before use.
        s = (-delta) % length if roll_fwd else delta % length
        return pltpu.roll(v, s, axis=1) if s else v

    # Horizontal (within image row) windowed sum: rolls on the XLU slot,
    # masked adds on the VPU.  No VMEM round-trip.
    hsum = x
    for d in range(1, half + 1):
        m_r = c_ref[d - 1:d, :]                       # (1, L)
        m_l = c_ref[half + d - 1:half + d, :]
        hsum = hsum + m_r * shift_read(x, d) + m_l * shift_read(x, -d)

    # Vertical windowed sum: shifts by whole image rows, gated by row masks
    # (these also kill leakage across packed-plane junctions).
    vsum = hsum
    for d in range(1, half + 1):
        m_b = c_ref[2 * half + d - 1:2 * half + d, :]
        m_a = c_ref[3 * half + d - 1:3 * half + d, :]
        vsum = (vsum
                + m_b * shift_read(hsum, d * width)
                + m_a * shift_read(hsum, -d * width))

    inv_cnt = c_ref[4 * half:4 * half + 1, :]         # exact count_include_pad=False
    o_ref[...] = (vsum * inv_cnt - x).astype(o_ref.dtype)


# ----------------------------------------------------------------------------
# Constants (masks + 1/count), tiled g times for packed planes
# ----------------------------------------------------------------------------
def _pool_consts(height, width, half, g):
    n = height * width
    col = jnp.tile(jnp.arange(width, dtype=jnp.int32), height)       # (n,)
    row = jnp.repeat(jnp.arange(height, dtype=jnp.int32), width)     # (n,)
    rows_ = []
    for d in range(1, half + 1):                                     # right neighbour
        rows_.append((col <= width - 1 - d).astype(jnp.float32))
    for d in range(1, half + 1):                                     # left neighbour
        rows_.append((col >= d).astype(jnp.float32))
    for d in range(1, half + 1):                                     # below (row + d)
        rows_.append((row <= height - 1 - d).astype(jnp.float32))
    for d in range(1, half + 1):                                     # above (row - d)
        rows_.append((row >= d).astype(jnp.float32))
    h_idx = jnp.arange(height)
    w_idx = jnp.arange(width)
    rcnt = jnp.minimum(h_idx + half, height - 1) - jnp.maximum(h_idx - half, 0) + 1
    ccnt = jnp.minimum(w_idx + half, width - 1) - jnp.maximum(w_idx - half, 0) + 1
    counts = (rcnt[:, None] * ccnt[None, :]).astype(jnp.float32).reshape(n)
    rows_.append(1.0 / counts)
    c = jnp.stack(rows_, axis=0)                                     # (4*half+1, n)
    if g > 1:
        c = jnp.tile(c, (1, g))                                      # (4*half+1, g*n)
    return c


# ----------------------------------------------------------------------------
# One-time host-side probes (run outside jit)
# ----------------------------------------------------------------------------
@functools.lru_cache(maxsize=None)
def _roll_is_forward() -> bool:
    """Probe pltpu.roll's shift convention once on the real backend.

    Returns True iff pltpu.roll(v, s, axis)[j] == v[(j - s) % n]  (i.e. the
    jnp.roll convention: positive shift moves elements to higher indices).
    The pooling kernel adapts its shift signs to whichever convention holds,
    so border masking is always applied to the correct direction.
    """
    def probe(x_ref, o_ref):
        o_ref[...] = pltpu.roll(x_ref[...], 1, axis=1)

    x = jnp.broadcast_to(jnp.arange(128, dtype=jnp.float32), (8, 128))
    y = pl.pallas_call(probe, out_shape=jax.ShapeDtypeStruct((8, 128), jnp.float32))(x)
    return bool(jax.device_get(y)[0, 1] == 0.0)


@functools.lru_cache(maxsize=None)
def _chip_budget():
    """(target_block_bytes, vmem_limit_bytes, multi_core) per TPU generation."""
    try:
        kind = jax.devices()[0].device_kind.lower()
    except Exception:
        kind = ""
    big_vmem = any(t in kind for t in ("v4", "v5", "v6"))   # 128 MiB VMEM, 1 TC
    if big_vmem:
        # ~4x block (double-buffered in + out) ~= 32 MiB, well inside 128 MiB.
        return 8 * 1024 * 1024, 64 * 1024 * 1024, False
    # v7x (or unknown): 64 MiB physical VMEM, 2 TensorCores -> stay conservative.
    return 6 * 1024 * 1024, 48 * 1024 * 1024, True


# ----------------------------------------------------------------------------
# Public wrapper
# ----------------------------------------------------------------------------
def pooling_forward(x: jax.Array, pool_size: int = 3) -> jax.Array:
    """x: (B, C, H, W) -> AvgPool2d(pool_size, stride=1, pad=pool_size//2,
    count_include_pad=False)(x) - x"""
    if pool_size % 2 != 1 or pool_size < 1:
        # The symmetric-window formulation only matches PyTorch for odd sizes.
        raise ValueError("pooling_forward requires an odd pool_size")
    return _pooling_impl(x, int(pool_size), bool(_roll_is_forward()), _chip_budget())


@functools.partial(jax.jit, static_argnums=(1, 2, 3))
def _pooling_impl(x, pool_size, roll_fwd, budget):
    target_block_bytes, vmem_limit, multi_core = budget
    B, C, H, W = x.shape
    half = pool_size // 2
    M, N = B * C, H * W

    # Lane-dense packing: g whole planes per block row so the lane dim is a
    # multiple of 128; fall back to a plain (M, N) layout (Pallas pads lanes,
    # still correct) when the channel count doesn't cooperate.
    g = 1 if N % 128 == 0 else 128 // math.gcd(N, 128)
    if M % g != 0:
        g = 1
    rows, L = M // g, g * N

    consts = _pool_consts(H, W, half, g)

    # ---- block sizing: large contiguous DMAs; sublane-multiple (or full)
    # block rows; >=2 grid steps on multi-TensorCore chips.
    itemsize = jnp.dtype(x.dtype).itemsize
    row_bytes = L * itemsize
    tc = max(1, target_block_bytes // row_bytes)
    if tc < rows:
        tc = max(8, (tc // 8) * 8)
    if multi_core and rows >= 16 and tc > (rows + 1) // 2:
        tc = max(8, ((rows // 2) // 8) * 8)        # keep both v7x TCs busy
    tc = int(min(tc, rows))

    xf = x.reshape(rows, L)                        # metadata-only reshape
    kernel = functools.partial(_pool_kernel, width=W, half=half, length=L,
                               roll_fwd=roll_fwd)

    out = pl.pallas_call(
        kernel,
        out_shape=jax.ShapeDtypeStruct((rows, L), x.dtype),
        grid_spec=pltpu.PrefetchScalarGridSpec(
            num_scalar_prefetch=0,
            grid=(pl.cdiv(rows, tc),),
            in_specs=[
                pl.BlockSpec((tc, L), lambda i: (i, 0)),
                # constant block index -> not re-fetched on later grid steps
                pl.BlockSpec((4 * half + 1, L), lambda i: (0, 0)),
            ],
            out_specs=pl.BlockSpec((tc, L), lambda i: (i, 0)),
        ),
        compiler_params=pltpu.CompilerParams(
            dimension_semantics=("parallel",),
            vmem_limit_bytes=vmem_limit,
        ),
        cost_estimate=pl.CostEstimate(
            flops=int((8 * half + 2) * rows * L),
            transcendentals=0,
            bytes_accessed=int(2 * rows * L * itemsize + consts.size * 4),
        ),
    )(xf, consts)

    return out.reshape(B, C, H, W)


# ----------------------------------------------------------------------------
# Pure-JAX reference and self-test
# ----------------------------------------------------------------------------
def _reference(x, pool_size=3):
    """AvgPool2d(pool_size, stride=1, pad=pool_size//2, count_include_pad=False)(x) - x."""
    half = pool_size // 2
    B, C, H, W = x.shape
    xp = jnp.pad(x, ((0, 0), (0, 0), (half, half), (half, half)))
    ones = jnp.pad(jnp.ones((1, 1, H, W), x.dtype),
                   ((0, 0), (0, 0), (half, half), (half, half)))
    s = jnp.zeros_like(x)
    c = jnp.zeros((1, 1, H, W), x.dtype)
    for dy in range(pool_size):
        for dx in range(pool_size):
            s = s + xp[:, :, dy:dy + H, dx:dx + W]
            c = c + ones[:, :, dy:dy + H, dx:dx + W]
    return s / c - x


if __name__ == "__main__":
    key = jax.random.PRNGKey(0)

    # Primary case: f32, 16x16 (lane dim already a multiple of 128).
    B, C, H, W = 2, 4, 16, 16
    x = jax.random.normal(key, (B, C, H, W), dtype=jnp.float32)
    out = jax.block_until_ready(pooling_forward(x, pool_size=3))
    ref = _reference(x, pool_size=3)
    assert out.shape == (B, C, H, W)
    assert jnp.allclose(out, ref, atol=1e-5, rtol=1e-5), \
        float(jnp.max(jnp.abs(out - ref)))

    # Packed-plane case: 14x14 feature map (H*W=196 not a multiple of 128),
    # g=32 planes packed per lane-dense block row.
    k2 = jax.random.PRNGKey(1)
    x2 = jax.random.normal(k2, (2, 64, 14, 14), dtype=jnp.float32)
    out2 = jax.block_until_ready(pooling_forward(x2, pool_size=3))
    ref2 = _reference(x2, pool_size=3)
    assert jnp.allclose(out2, ref2, atol=1e-5, rtol=1e-5), \
        float(jnp.max(jnp.abs(out2 - ref2)))

    # bf16 case: HBM blocks stay bf16, compute in f32 registers.
    x3 = x.astype(jnp.bfloat16)
    out3 = jax.block_until_ready(pooling_forward(x3, pool_size=3))
    ref3 = _reference(x3.astype(jnp.float32), pool_size=3)
    assert jnp.allclose(out3.astype(jnp.float32), ref3, atol=3e-2, rtol=3e-2), \
        float(jnp.max(jnp.abs(out3.astype(jnp.float32) - ref3)))

    print("KERNEL_OK")
</pallas_src>

<mosaic_0001>
module attributes {stable_mosaic.version = 11 : i64} {
  func.func @probe(%arg0: memref<8x128xf32, #tpu.memory_space<vmem>>, %arg1: memref<8x128xf32, #tpu.memory_space<vmem>>) attributes {dimension_semantics = [], scalar_prefetch = 0 : i64, scratch_operands = 0 : i64, tpu.core_type = #tpu.core_type<tc>} {
    %c0 = arith.constant 0 : index
    %c0_0 = arith.constant 0 : index
    %0 = vector.load %arg0[%c0, %c0_0] : memref<8x128xf32, #tpu.memory_space<vmem>>, vector<8x128xf32>
    %c1_i32 = arith.constant 1 : i32
    %1 = tpu.dynamic_rotate %0 by %c1_i32 dim 1 : vector<8x128xf32>, i32 -> vector<8x128xf32>
    %c0_1 = arith.constant 0 : index
    %c0_2 = arith.constant 0 : index
    %2 = vector.load %arg1[%c0_1, %c0_2] : memref<8x128xf32, #tpu.memory_space<vmem>>, vector<8x128xf32>
    tpu.vector_store %arg1[%c0_1, %c0_2], %1 {strides = array<i32>} : memref<8x128xf32, #tpu.memory_space<vmem>>, vector<8x128xf32>,
    return
  }
}

</mosaic_0001>

<llo_original>
// kernel: tpu_custom_call.1
$region0: #{tpu_custom_call.1}
  #allocation0 [shape = 'u32[]', space=smem, size = 0x4, offset = 0x4, fixed_abs, tag = 'smem constant byte address 0x4 - core index']
  #allocation1 [shape = 'u32[144,128]{1,0:T(1,128)}', space=vmem, size = 0x12000, scoped, tag = 'internal scratch']
  %s0 = inlined_call_operand.hbm [shape: f32[8,128], index: 0, kind: input, shape index: {}]
  %s1 = inlined_call_operand.hbm [shape: f32[8,128], index: 1, kind: output, shape index: {}]
  %s2 = sld [smem:[#allocation0]]
  $region18: #{tpu_custom_call.1} parent=0
    _
  %s4 = ssub.s32 1, %s2
  %s5 = scalar_select 0, %s4, %s2
  $region1: #{tpu_custom_call.1} parent=0
    #allocation2 [shape = 'u8[4096]{0}', space=vmem, size = 0x1000, scoped, tag = 'input window, operand 0, single buffered']
    #allocation3 [shape = 's32[1]{0}', space=sflag, size = 0x4, scoped, tag = 'scoped memory for tpu_custom_call.1']
    #allocation4 [shape = 's32[1]{0}', space=sflag, size = 0x4, scoped, tag = 'scoped memory for tpu_custom_call.1']
    #allocation5 [shape = 'u8[4096]{0}', space=vmem, size = 0x1000, scoped, tag = 'output window, operand 0, single buffered']
    %6 = vsyncpa [#allocation3], 0
    %7 = vsyncpa [#allocation4], 0
    // Predicated region
    $region2: #{tpu_custom_call.1} parent=1 // pred_check
      _
    $region3: #{tpu_custom_call.1} parent=1 // pred_check_branch
      %9 = sbr.rel (0) target = $region5
    $region4: #{tpu_custom_call.1} parent=1 // pred_region
      %s11 = ssub.s32 128, 128
      %12 = vsyncadd [#allocation3], %s11
      %s14 = sshll.u32 [#allocation2], 4
      %s15 = int_to_ptr.vmem [resolvable:$true] %s14
      %17 = dma.hbm_to_vmem [thread:$0]  %s0, 128, %s15, [#allocation3]
    $region5: #{tpu_custom_call.1} parent=1 // pred_fallthru
      _
    // Predicated region
    $region6: #{tpu_custom_call.1} parent=1 // pred_check
      _
    $region7: #{tpu_custom_call.1} parent=1 // pred_check_branch
      %19 = sbr.rel (0) target = $region9
    $region8: #{tpu_custom_call.1} parent=1 // pred_region
      %20 = dma.done [#allocation3], 128
    $region9: #{tpu_custom_call.1} parent=1 // pred_fallthru
      _
    %v21 = vld [vmem:[#allocation2] sm:$0xff]
    %22 = vrot.lane.b32.xlu0 %v21, 1
    %v23 = vpop.permute.xlu0 %22
    %24 = vst [vmem:[#allocation5] sm:$0xff] %v23
    // Predicated region
    $region10: #{tpu_custom_call.1} parent=1 // pred_check
      _
    $region11: #{tpu_custom_call.1} parent=1 // pred_check_branch
      %26 = sbr.rel (0) target = $region13
    $region12: #{tpu_custom_call.1} parent=1 // pred_region
      %s28 = ssub.s32 128, 128
      %29 = vsyncadd [#allocation4], %s28
      %s31 = sshll.u32 [#allocation5], 4
      %s32 = int_to_ptr.vmem [resolvable:$true] %s31
      %34 = dma.vmem_to_hbm [thread:$0]  %s32, 128, %s1, [#allocation4]
    $region13: #{tpu_custom_call.1} parent=1 // pred_fallthru
      _
    // Predicated region
    $region14: #{tpu_custom_call.1} parent=1 // pred_check
      _
    $region15: #{tpu_custom_call.1} parent=1 // pred_check_branch
      %36 = sbr.rel (0) target = $region17
    $region16: #{tpu_custom_call.1} parent=1 // pred_region
      %37 = dma.done [#allocation4], 128
    $region17: #{tpu_custom_call.1} parent=1 // pred_fallthru
      _
    %38 = vsyncpa [#allocation3], 1
    %39 = vsyncpa [#allocation4], 1

</llo_original>
